<compile_context>
chip_gen: v5e
topology: v5e:2x2
jax: 0.10.0
libtpu: 0.0.40
codegen_flags: <defaults>
</compile_context>

<pallas_src>
import math
from functools import partial

import jax
import jax.numpy as jnp
from jax.experimental import pallas as pl
from jax.experimental.pallas import tpu as pltpu


# --------------------------------------------------------------------------------------
# Kernel 1: Q/K/V projections (one grid step = one (s_blk, E) activation tile per stream).
#   xq/xk/xv_ref : (1, s_blk, E) bf16
#   wq/wk/wv_ref : (E, E)        bf16   (wq has 1/sqrt(head_dim) folded in)
#   bq/bk/bv_ref : (1, E)        f32    (bq has 1/sqrt(head_dim) folded in)
#   qo/ko/vo_ref : (1, s_blk, E) bf16
# --------------------------------------------------------------------------------------
def qkv_proj_kernel(xq_ref, xk_ref, xv_ref,
                    wq_ref, wk_ref, wv_ref,
                    bq_ref, bk_ref, bv_ref,
                    qo_ref, ko_ref, vo_ref):
    def proj(x_ref, w_ref, b_ref, o_ref):
        y = jnp.dot(x_ref[0], w_ref[...], preferred_element_type=jnp.float32)  # (s_blk, E) f32
        o_ref[0] = (y + b_ref[...]).astype(o_ref.dtype)

    proj(xq_ref, wq_ref, bq_ref, qo_ref)
    proj(xk_ref, wk_ref, bk_ref, ko_ref)
    proj(xv_ref, wv_ref, bv_ref, vo_ref)


# --------------------------------------------------------------------------------------
# Kernel 2: flash-style attention (online softmax over kv tiles) + output projection.
#   q_ref/k_ref/v_ref: (1, T, E) bf16 tiles of the projected Q (pre-scaled), K, V
#   wo_ref: (E, E) bf16, bo_ref: (1, E) f32
#   o_ref : (1, Tq, E) output tile (written once, at the last kv step)
#   scratch: qh (H,Tq,hd) bf16, m (H,Tq,1) f32, l (H,Tq,1) f32, acc (H,Tq,hd) f32
#
# NOTE: correctness of the epilogue requires the kv axis to be the innermost grid axis and
# the output block index to be ki-invariant (both true here); do not reorder the grid.
# --------------------------------------------------------------------------------------
def flash_attn_kernel(q_ref, k_ref, v_ref, wo_ref, bo_ref, o_ref,
                      qh_ref, m_ref, l_ref, acc_ref,
                      *, num_heads, head_dim, exp_dtype):
    ki = pl.program_id(2)
    tq = q_ref.shape[1]
    tkv = k_ref.shape[1]

    @pl.when(ki == 0)
    def _():
        m_ref[...] = jnp.full(m_ref.shape, -jnp.inf, jnp.float32)
        l_ref[...] = jnp.zeros(l_ref.shape, jnp.float32)
        acc_ref[...] = jnp.zeros(acc_ref.shape, jnp.float32)
        # Hoist the (Tq, E) -> (H, Tq, hd) relayout of Q out of the kv loop (Q block is
        # ki-invariant); reused by every kv step below.
        qh_ref[...] = jnp.swapaxes(q_ref[0].reshape(tq, num_heads, head_dim), 0, 1)

    q = qh_ref[...]                                                          # (H, Tq, hd) bf16
    k = jnp.swapaxes(k_ref[0].reshape(tkv, num_heads, head_dim), 0, 1)       # (H, Tkv, hd) bf16
    v = jnp.swapaxes(v_ref[0].reshape(tkv, num_heads, head_dim), 0, 1)       # (H, Tkv, hd) bf16

    # Scores for all heads at once; 1/sqrt(head_dim) already folded into the Q projection.
    # TODO(synk): optional attention mask (mask==0 -> -1e9) not wired in; module default is mask=None.
    s = jnp.einsum("hqd,hkd->hqk", q, k, preferred_element_type=jnp.float32)  # (H, Tq, Tkv) f32

    # Online (numerically stable) softmax update; m/alpha/l stay f32.
    m_prev = m_ref[...]
    m_new = jnp.maximum(m_prev, jnp.max(s, axis=-1, keepdims=True))
    alpha = jnp.exp(m_prev - m_new)
    delta = s - m_new
    if jnp.dtype(exp_dtype) != jnp.dtype(jnp.float32):
        delta = delta.astype(exp_dtype)          # bf16 exp on v6e/v7x (EUP bf16 path)
    p = jnp.exp(delta)
    l_ref[...] = alpha * l_ref[...] + jnp.sum(p, axis=-1, keepdims=True, dtype=jnp.float32)
    acc_ref[...] = alpha * acc_ref[...] + jnp.einsum(
        "hqk,hkd->hqd", p.astype(v.dtype), v, preferred_element_type=jnp.float32)
    m_ref[...] = m_new

    @pl.when(ki == pl.num_programs(2) - 1)
    def _():
        ctx = acc_ref[...] * pl.reciprocal(l_ref[...], approx=True)           # (H, Tq, hd) f32
        ctx = jnp.swapaxes(ctx, 0, 1).reshape(tq, num_heads * head_dim)       # (Tq, E), no concat
        out = jnp.dot(ctx.astype(wo_ref.dtype), wo_ref[...],
                      preferred_element_type=jnp.float32) + bo_ref[...]       # (Tq, E) f32
        o_ref[0] = out.astype(o_ref.dtype)


# --------------------------------------------------------------------------------------
# Wrapper
# --------------------------------------------------------------------------------------
def _softmax_exp_dtype():
    """bf16 exp only where the EUP has a bf16 path (v6e / v7x); f32 elsewhere (e.g. v5e)."""
    try:
        kind = jax.devices()[0].device_kind.lower()
    except Exception:
        return jnp.float32
    return jnp.bfloat16 if ("v6" in kind or "v7" in kind) else jnp.float32


def multi_head_attention(query, key, value, params, *, num_heads,
                         q_tile=256, kv_tile=256, proj_tile=256):
    """query/key/value: (B, S, E). params: dict of (in,out)-layout weights and (1,E) biases."""
    B, S, E = query.shape
    assert key.shape == (B, S, E) and value.shape == (B, S, E)
    assert E % num_heads == 0
    head_dim = E // num_heads
    scale = head_dim ** 0.5
    mxu_dtype = jnp.bfloat16   # MXU operands; accumulation & softmax stats stay f32.

    # Fold the 1/sqrt(head_dim) scale into the Q projection; pre-cast weights to bf16.
    wq = (params["wq"] / scale).astype(mxu_dtype)
    wk = params["wk"].astype(mxu_dtype)
    wv = params["wv"].astype(mxu_dtype)
    wo = params["wo"].astype(mxu_dtype)
    bq = (params["bq"] / scale).astype(jnp.float32)
    bk = params["bk"].astype(jnp.float32)
    bv = params["bv"].astype(jnp.float32)
    bo = params["bo"].astype(jnp.float32)

    xq = query.astype(mxu_dtype)
    xk = key.astype(mxu_dtype)
    xv = value.astype(mxu_dtype)

    s_blk = min(proj_tile, S)
    tq = min(q_tile, S)
    tkv = min(kv_tile, S)
    assert S % s_blk == 0 and S % tq == 0 and S % tkv == 0, "seq_len must divide the tile sizes"

    # ---- 1) Q/K/V projections --------------------------------------------------------
    # VMEM budget: 3 activation double-buffers in/out + 3 resident (E,E) bf16 weights + temps.
    # TODO(synk): for very large E on v5e/v7x, tile the weight N-dim instead of a resident (E,E) block.
    proj_vmem = (3 * 2 * s_blk * E * 2      # x double buffers (bf16)
                 + 3 * 2 * E * E * 2        # weights (bf16)
                 + 3 * 2 * E * 4            # biases (f32)
                 + 3 * 2 * s_blk * E * 2    # outputs (bf16)
                 + 3 * s_blk * E * 4)       # f32 matmul temporaries
    proj_limit = min(64 << 20, max(32 << 20, int(1.3 * proj_vmem)))

    q_p, k_p, v_p = pl.pallas_call(
        qkv_proj_kernel,
        out_shape=(jax.ShapeDtypeStruct((B, S, E), mxu_dtype),
                   jax.ShapeDtypeStruct((B, S, E), mxu_dtype),
                   jax.ShapeDtypeStruct((B, S, E), mxu_dtype)),
        grid_spec=pltpu.PrefetchScalarGridSpec(
            num_scalar_prefetch=0,
            grid=(B, S // s_blk),
            in_specs=[
                pl.BlockSpec((1, s_blk, E), lambda b, s: (b, s, 0)),   # query tile
                pl.BlockSpec((1, s_blk, E), lambda b, s: (b, s, 0)),   # key tile
                pl.BlockSpec((1, s_blk, E), lambda b, s: (b, s, 0)),   # value tile
                pl.BlockSpec((E, E), lambda b, s: (0, 0)),             # Wq (pre-scaled)
                pl.BlockSpec((E, E), lambda b, s: (0, 0)),             # Wk
                pl.BlockSpec((E, E), lambda b, s: (0, 0)),             # Wv
                pl.BlockSpec((1, E), lambda b, s: (0, 0)),             # bq (pre-scaled)
                pl.BlockSpec((1, E), lambda b, s: (0, 0)),             # bk
                pl.BlockSpec((1, E), lambda b, s: (0, 0)),             # bv
            ],
            out_specs=[
                pl.BlockSpec((1, s_blk, E), lambda b, s: (b, s, 0)),
                pl.BlockSpec((1, s_blk, E), lambda b, s: (b, s, 0)),
                pl.BlockSpec((1, s_blk, E), lambda b, s: (b, s, 0)),
            ],
        ),
        compiler_params=pltpu.CompilerParams(
            dimension_semantics=("parallel", "parallel"),
            vmem_limit_bytes=proj_limit),
    )(xq, xk, xv, wq, wk, wv, bq, bk, bv)

    # ---- 2) flash attention + output projection --------------------------------------
    out_bytes = jnp.dtype(query.dtype).itemsize
    flash_vmem = (2 * tq * E * 2                        # Q double buffer (bf16)
                  + 2 * 2 * tkv * E * 2                 # K + V double buffers (bf16)
                  + 2 * E * E * 2                       # Wo (bf16)
                  + 2 * E * 4                           # bo
                  + 2 * tq * E * out_bytes              # output double buffer
                  + tq * E * 2                          # qh scratch (bf16)
                  + 2 * num_heads * tq * 128 * 4        # m, l (lane-padded to 128)
                  + tq * E * 4                          # acc (f32)
                  + 4 * num_heads * tq * max(tkv, 128) * 4)   # s / p temporaries
    flash_limit = min(64 << 20, max(32 << 20, int(1.3 * flash_vmem)))

    kernel = partial(flash_attn_kernel, num_heads=num_heads, head_dim=head_dim,
                     exp_dtype=_softmax_exp_dtype())
    return pl.pallas_call(
        kernel,
        out_shape=jax.ShapeDtypeStruct((B, S, E), query.dtype),
        grid_spec=pltpu.PrefetchScalarGridSpec(
            num_scalar_prefetch=0,
            grid=(B, S // tq, S // tkv),                          # kv axis innermost
            in_specs=[
                pl.BlockSpec((1, tq, E), lambda b, qi, ki: (b, qi, 0)),    # Q (scaled)
                pl.BlockSpec((1, tkv, E), lambda b, qi, ki: (b, ki, 0)),   # K
                pl.BlockSpec((1, tkv, E), lambda b, qi, ki: (b, ki, 0)),   # V
                pl.BlockSpec((E, E), lambda b, qi, ki: (0, 0)),            # Wo
                pl.BlockSpec((1, E), lambda b, qi, ki: (0, 0)),            # bo
            ],
            out_specs=pl.BlockSpec((1, tq, E), lambda b, qi, ki: (b, qi, 0)),
            scratch_shapes=[
                pltpu.VMEM((num_heads, tq, head_dim), mxu_dtype),     # qh (hoisted Q relayout)
                pltpu.VMEM((num_heads, tq, 1), jnp.float32),          # m (running max)
                pltpu.VMEM((num_heads, tq, 1), jnp.float32),          # l (running denom)
                pltpu.VMEM((num_heads, tq, head_dim), jnp.float32),   # acc (unnormalized ctx)
            ],
        ),
        compiler_params=pltpu.CompilerParams(
            dimension_semantics=("parallel", "parallel", "arbitrary"),
            vmem_limit_bytes=flash_limit),
    )(q_p, k_p, v_p, wo, bo)


def init_params(key, embed_dim):
    """nn.Linear-style init (uniform +/- 1/sqrt(fan_in)); weights stored as (in, out) = W_pytorch.T."""
    bound = 1.0 / math.sqrt(embed_dim)
    keys = jax.random.split(key, 8)

    def u(k, shape):
        return jax.random.uniform(k, shape, jnp.float32, -bound, bound)

    return {
        "wq": u(keys[0], (embed_dim, embed_dim)), "bq": u(keys[1], (1, embed_dim)),
        "wk": u(keys[2], (embed_dim, embed_dim)), "bk": u(keys[3], (1, embed_dim)),
        "wv": u(keys[4], (embed_dim, embed_dim)), "bv": u(keys[5], (1, embed_dim)),
        "wo": u(keys[6], (embed_dim, embed_dim)), "bo": u(keys[7], (1, embed_dim)),
    }


def reference_mha(query, key, value, params, *, num_heads):
    """Pure-JAX f32 reference matching the PyTorch forward (mask=None)."""
    B, S, E = query.shape
    hd = E // num_heads
    Q = query @ params["wq"] + params["bq"][0]
    K = key @ params["wk"] + params["bk"][0]
    V = value @ params["wv"] + params["bv"][0]

    def split(t):
        return t.reshape(B, S, num_heads, hd).transpose(0, 2, 1, 3)

    Q, K, V = split(Q), split(K), split(V)
    scores = jnp.einsum("bhqd,bhkd->bhqk", Q, K) / (hd ** 0.5)
    w = jax.nn.softmax(scores, axis=-1)
    out = jnp.einsum("bhqk,bhkd->bhqd", w, V)
    out = out.transpose(0, 2, 1, 3).reshape(B, S, E)
    return out @ params["wo"] + params["bo"][0]


if __name__ == "__main__":
    # Small test shapes; E is a multiple of 128 so all HBM blocks are lane-dense.
    batch, seq_len, embed_dim, num_heads = 2, 8, 128, 4

    root = jax.random.PRNGKey(0)
    kq, kk, kv, kp = jax.random.split(root, 4)
    query = jax.random.normal(kq, (batch, seq_len, embed_dim), jnp.float32)
    key_t = jax.random.normal(kk, (batch, seq_len, embed_dim), jnp.float32)
    value = jax.random.normal(kv, (batch, seq_len, embed_dim), jnp.float32)
    params = init_params(kp, embed_dim)

    out = multi_head_attention(query, key_t, value, params, num_heads=num_heads)
    out = jax.block_until_ready(out)

    ref = reference_mha(query, key_t, value, params, num_heads=num_heads)
    assert out.shape == (batch, seq_len, embed_dim)
    # bf16 MXU operands (and bf16 exp on v6e/v7x) with f32 accumulation -> ~1e-2-level tolerance
    # vs the pure-f32 reference.
    assert jnp.allclose(out, ref, atol=2e-2, rtol=2e-2), "mismatch vs reference"

    print("KERNEL_OK")
</pallas_src>

<mosaic_0001>
module attributes {stable_mosaic.version = 11 : i64} {
  func.func @qkv_proj_kernel(%arg0: i32, %arg1: i32, %arg2: memref<1x8x128xbf16, #tpu.memory_space<vmem>>, %arg3: memref<1x8x128xbf16, #tpu.memory_space<vmem>>, %arg4: memref<1x8x128xbf16, #tpu.memory_space<vmem>>, %arg5: memref<128x128xbf16, #tpu.memory_space<vmem>>, %arg6: memref<128x128xbf16, #tpu.memory_space<vmem>>, %arg7: memref<128x128xbf16, #tpu.memory_space<vmem>>, %arg8: memref<1x128xf32, #tpu.memory_space<vmem>>, %arg9: memref<1x128xf32, #tpu.memory_space<vmem>>, %arg10: memref<1x128xf32, #tpu.memory_space<vmem>>, %arg11: memref<1x8x128xbf16, #tpu.memory_space<vmem>>, %arg12: memref<1x8x128xbf16, #tpu.memory_space<vmem>>, %arg13: memref<1x8x128xbf16, #tpu.memory_space<vmem>>) attributes {dimension_semantics = [#tpu.dimension_semantics<parallel>, #tpu.dimension_semantics<parallel>], iteration_bounds = array<i64: 2, 1>, scalar_prefetch = 0 : i64, scratch_operands = 0 : i64, tpu.core_type = #tpu.core_type<tc>, window_params = [{transform_indices = @transform_0, window_bounds = array<i64: 1, 8, 128>}, {transform_indices = @transform_1, window_bounds = array<i64: 1, 8, 128>}, {transform_indices = @transform_2, window_bounds = array<i64: 1, 8, 128>}, {pipeline_mode = #tpu.pipeline_mode<synchronous>, transform_indices = @transform_3, window_bounds = array<i64: 128, 128>}, {pipeline_mode = #tpu.pipeline_mode<synchronous>, transform_indices = @transform_4, window_bounds = array<i64: 128, 128>}, {pipeline_mode = #tpu.pipeline_mode<synchronous>, transform_indices = @transform_5, window_bounds = array<i64: 128, 128>}, {pipeline_mode = #tpu.pipeline_mode<synchronous>, transform_indices = @transform_6, window_bounds = array<i64: 1, 128>}, {pipeline_mode = #tpu.pipeline_mode<synchronous>, transform_indices = @transform_7, window_bounds = array<i64: 1, 128>}, {pipeline_mode = #tpu.pipeline_mode<synchronous>, transform_indices = @transform_8, window_bounds = array<i64: 1, 128>}, {transform_indices = @transform_9, window_bounds = array<i64: 1, 8, 128>}, {transform_indices = @transform_10, window_bounds = array<i64: 1, 8, 128>}, {transform_indices = @transform_11, window_bounds = array<i64: 1, 8, 128>}]} {
    %c0 = arith.constant 0 : index
    %c0_0 = arith.constant 0 : index
    %c0_1 = arith.constant 0 : index
    %0 = vector.load %arg2[%c0, %c0_0, %c0_1] : memref<1x8x128xbf16, #tpu.memory_space<vmem>>, vector<1x8x128xbf16>
    %1 = vector.shape_cast %0 : vector<1x8x128xbf16> to vector<8x128xbf16>
    %c0_2 = arith.constant 0 : index
    %c0_3 = arith.constant 0 : index
    %2 = vector.load %arg5[%c0_2, %c0_3] : memref<128x128xbf16, #tpu.memory_space<vmem>>, vector<128x128xbf16>
    %cst = arith.constant dense<0.000000e+00> : vector<8x128xf32>
    %3 = tpu.matmul %1, %2, %cst {dimension_numbers = #tpu.dot_dimension_numbers<[1], [0], [0], [1], [0, 0, 1, 1], [], []>} : vector<8x128xbf16>, vector<128x128xbf16>, vector<8x128xf32> -> vector<8x128xf32>
    %c0_4 = arith.constant 0 : index
    %c0_5 = arith.constant 0 : index
    %4 = vector.load %arg8[%c0_4, %c0_5] : memref<1x128xf32, #tpu.memory_space<vmem>>, vector<1x128xf32>
    %5 = vector.broadcast %4 : vector<1x128xf32> to vector<8x128xf32>
    %6 = arith.addf %3, %5 : vector<8x128xf32>
    %7 = arith.truncf %6 : vector<8x128xf32> to vector<8x128xbf16>
    %c0_6 = arith.constant 0 : index
    %c0_7 = arith.constant 0 : index
    %c0_8 = arith.constant 0 : index
    %8 = vector.load %arg11[%c0_6, %c0_7, %c0_8] : memref<1x8x128xbf16, #tpu.memory_space<vmem>>, vector<1x8x128xbf16>
    %9 = vector.shape_cast %8 : vector<1x8x128xbf16> to vector<8x128xbf16>
    %10 = vector.shape_cast %7 : vector<8x128xbf16> to vector<1x8x128xbf16>
    tpu.vector_store %arg11[%c0_6, %c0_7, %c0_8], %10 {strides = array<i32>} : memref<1x8x128xbf16, #tpu.memory_space<vmem>>, vector<1x8x128xbf16>,
    %c0_9 = arith.constant 0 : index
    %c0_10 = arith.constant 0 : index
    %c0_11 = arith.constant 0 : index
    %11 = vector.load %arg3[%c0_9, %c0_10, %c0_11] : memref<1x8x128xbf16, #tpu.memory_space<vmem>>, vector<1x8x128xbf16>
    %12 = vector.shape_cast %11 : vector<1x8x128xbf16> to vector<8x128xbf16>
    %c0_12 = arith.constant 0 : index
    %c0_13 = arith.constant 0 : index
    %13 = vector.load %arg6[%c0_12, %c0_13] : memref<128x128xbf16, #tpu.memory_space<vmem>>, vector<128x128xbf16>
    %cst_14 = arith.constant dense<0.000000e+00> : vector<8x128xf32>
    %14 = tpu.matmul %12, %13, %cst_14 {dimension_numbers = #tpu.dot_dimension_numbers<[1], [0], [0], [1], [0, 0, 1, 1], [], []>} : vector<8x128xbf16>, vector<128x128xbf16>, vector<8x128xf32> -> vector<8x128xf32>
    %c0_15 = arith.constant 0 : index
    %c0_16 = arith.constant 0 : index
    %15 = vector.load %arg9[%c0_15, %c0_16] : memref<1x128xf32, #tpu.memory_space<vmem>>, vector<1x128xf32>
    %16 = vector.broadcast %15 : vector<1x128xf32> to vector<8x128xf32>
    %17 = arith.addf %14, %16 : vector<8x128xf32>
    %18 = arith.truncf %17 : vector<8x128xf32> to vector<8x128xbf16>
    %c0_17 = arith.constant 0 : index
    %c0_18 = arith.constant 0 : index
    %c0_19 = arith.constant 0 : index
    %19 = vector.load %arg12[%c0_17, %c0_18, %c0_19] : memref<1x8x128xbf16, #tpu.memory_space<vmem>>, vector<1x8x128xbf16>
    %20 = vector.shape_cast %19 : vector<1x8x128xbf16> to vector<8x128xbf16>
    %21 = vector.shape_cast %18 : vector<8x128xbf16> to vector<1x8x128xbf16>
    tpu.vector_store %arg12[%c0_17, %c0_18, %c0_19], %21 {strides = array<i32>} : memref<1x8x128xbf16, #tpu.memory_space<vmem>>, vector<1x8x128xbf16>,
    %c0_20 = arith.constant 0 : index
    %c0_21 = arith.constant 0 : index
    %c0_22 = arith.constant 0 : index
    %22 = vector.load %arg4[%c0_20, %c0_21, %c0_22] : memref<1x8x128xbf16, #tpu.memory_space<vmem>>, vector<1x8x128xbf16>
    %23 = vector.shape_cast %22 : vector<1x8x128xbf16> to vector<8x128xbf16>
    %c0_23 = arith.constant 0 : index
    %c0_24 = arith.constant 0 : index
    %24 = vector.load %arg7[%c0_23, %c0_24] : memref<128x128xbf16, #tpu.memory_space<vmem>>, vector<128x128xbf16>
    %cst_25 = arith.constant dense<0.000000e+00> : vector<8x128xf32>
    %25 = tpu.matmul %23, %24, %cst_25 {dimension_numbers = #tpu.dot_dimension_numbers<[1], [0], [0], [1], [0, 0, 1, 1], [], []>} : vector<8x128xbf16>, vector<128x128xbf16>, vector<8x128xf32> -> vector<8x128xf32>
    %c0_26 = arith.constant 0 : index
    %c0_27 = arith.constant 0 : index
    %26 = vector.load %arg10[%c0_26, %c0_27] : memref<1x128xf32, #tpu.memory_space<vmem>>, vector<1x128xf32>
    %27 = vector.broadcast %26 : vector<1x128xf32> to vector<8x128xf32>
    %28 = arith.addf %25, %27 : vector<8x128xf32>
    %29 = arith.truncf %28 : vector<8x128xf32> to vector<8x128xbf16>
    %c0_28 = arith.constant 0 : index
    %c0_29 = arith.constant 0 : index
    %c0_30 = arith.constant 0 : index
    %30 = vector.load %arg13[%c0_28, %c0_29, %c0_30] : memref<1x8x128xbf16, #tpu.memory_space<vmem>>, vector<1x8x128xbf16>
    %31 = vector.shape_cast %30 : vector<1x8x128xbf16> to vector<8x128xbf16>
    %32 = vector.shape_cast %29 : vector<8x128xbf16> to vector<1x8x128xbf16>
    tpu.vector_store %arg13[%c0_28, %c0_29, %c0_30], %32 {strides = array<i32>} : memref<1x8x128xbf16, #tpu.memory_space<vmem>>, vector<1x8x128xbf16>,
    return
  }
  func.func @transform_0(%arg0: i32, %arg1: i32) -> (i32, i32, i32) {
    %c0_i32 = arith.constant 0 : i32
    %c0_i32_0 = arith.constant 0 : i32
    return %arg0, %arg1, %c0_i32 : i32, i32, i32
  }
  func.func @transform_1(%arg0: i32, %arg1: i32) -> (i32, i32, i32) {
    %c0_i32 = arith.constant 0 : i32
    %c0_i32_0 = arith.constant 0 : i32
    return %arg0, %arg1, %c0_i32 : i32, i32, i32
  }
  func.func @transform_2(%arg0: i32, %arg1: i32) -> (i32, i32, i32) {
    %c0_i32 = arith.constant 0 : i32
    %c0_i32_0 = arith.constant 0 : i32
    return %arg0, %arg1, %c0_i32 : i32, i32, i32
  }
  func.func @transform_3(%arg0: i32, %arg1: i32) -> (i32, i32) {
    %c0_i32 = arith.constant 0 : i32
    %c0_i32_0 = arith.constant 0 : i32
    %c0_i32_1 = arith.constant 0 : i32
    return %c0_i32, %c0_i32_0 : i32, i32
  }
  func.func @transform_4(%arg0: i32, %arg1: i32) -> (i32, i32) {
    %c0_i32 = arith.constant 0 : i32
    %c0_i32_0 = arith.constant 0 : i32
    %c0_i32_1 = arith.constant 0 : i32
    return %c0_i32, %c0_i32_0 : i32, i32
  }
  func.func @transform_5(%arg0: i32, %arg1: i32) -> (i32, i32) {
    %c0_i32 = arith.constant 0 : i32
    %c0_i32_0 = arith.constant 0 : i32
    %c0_i32_1 = arith.constant 0 : i32
    return %c0_i32, %c0_i32_0 : i32, i32
  }
  func.func @transform_6(%arg0: i32, %arg1: i32) -> (i32, i32) {
    %c0_i32 = arith.constant 0 : i32
    %c0_i32_0 = arith.constant 0 : i32
    %c0_i32_1 = arith.constant 0 : i32
    return %c0_i32, %c0_i32_0 : i32, i32
  }
  func.func @transform_7(%arg0: i32, %arg1: i32) -> (i32, i32) {
    %c0_i32 = arith.constant 0 : i32
    %c0_i32_0 = arith.constant 0 : i32
    %c0_i32_1 = arith.constant 0 : i32
    return %c0_i32, %c0_i32_0 : i32, i32
  }
  func.func @transform_8(%arg0: i32, %arg1: i32) -> (i32, i32) {
    %c0_i32 = arith.constant 0 : i32
    %c0_i32_0 = arith.constant 0 : i32
    %c0_i32_1 = arith.constant 0 : i32
    return %c0_i32, %c0_i32_0 : i32, i32
  }
  func.func @transform_9(%arg0: i32, %arg1: i32) -> (i32, i32, i32) {
    %c0_i32 = arith.constant 0 : i32
    %c0_i32_0 = arith.constant 0 : i32
    return %arg0, %arg1, %c0_i32 : i32, i32, i32
  }
  func.func @transform_10(%arg0: i32, %arg1: i32) -> (i32, i32, i32) {
    %c0_i32 = arith.constant 0 : i32
    %c0_i32_0 = arith.constant 0 : i32
    return %arg0, %arg1, %c0_i32 : i32, i32, i32
  }
  func.func @transform_11(%arg0: i32, %arg1: i32) -> (i32, i32, i32) {
    %c0_i32 = arith.constant 0 : i32
    %c0_i32_0 = arith.constant 0 : i32
    return %arg0, %arg1, %c0_i32 : i32, i32, i32
  }
}

</mosaic_0001>

<llo_original>
// kernel: tpu_custom_call.1
$region0: #{tpu_custom_call.1}
  #allocation0 [shape = 'u32[]', space=smem, size = 0x4, offset = 0x4, fixed_abs, tag = 'smem constant byte address 0x4 - core index']
  #allocation1 [shape = 'u32[72,128]{1,0:T(1,128)}', space=vmem, size = 0x9000, scoped, tag = 'internal scratch']
  %s0 = inlined_call_operand.hbm [shape: bf16[2,8,128], index: 0, kind: input, shape index: {}]
  %s1 = inlined_call_operand.hbm [shape: bf16[2,8,128], index: 1, kind: input, shape index: {}]
  %s2 = inlined_call_operand.hbm [shape: bf16[2,8,128], index: 2, kind: input, shape index: {}]
  %s3 = inlined_call_operand.hbm [shape: bf16[128,128], index: 3, kind: input, shape index: {}]
  %s4 = inlined_call_operand.hbm [shape: bf16[128,128], index: 4, kind: input, shape index: {}]
  %s5 = inlined_call_operand.hbm [shape: bf16[128,128], index: 5, kind: input, shape index: {}]
  %s6 = inlined_call_operand.vmem [shape: f32[1,128], index: 6, kind: input, shape index: {}]
  %s7 = inlined_call_operand.vmem [shape: f32[1,128], index: 7, kind: input, shape index: {}]
  %s8 = inlined_call_operand.vmem [shape: f32[1,128], index: 8, kind: input, shape index: {}]
  %s9 = inlined_call_operand.hbm [shape: bf16[2,8,128], index: 9, kind: output, shape index: {0}]
  %s10 = inlined_call_operand.hbm [shape: bf16[2,8,128], index: 10, kind: output, shape index: {1}]
  %s11 = inlined_call_operand.hbm [shape: bf16[2,8,128], index: 11, kind: output, shape index: {2}]
  %12 = xla_tuple %s9, %s10, %s11
  %s13 = sld [smem:[#allocation0]]
  $region109: #{tpu_custom_call.1} parent=0
    _
  %s15 = ssub.s32 1, %s13
  %s16 = scalar_select 0, %s15, %s13
  $region1: #{tpu_custom_call.1} parent=0
    #allocation2 [shape = 'u8[4096]{0}', space=vmem, size = 0x1000, scoped, tag = 'input window, operand 0']
    #allocation3 [shape = 's32[2]{0}', space=sflag, size = 0x8, scoped, tag = 'scoped memory for tpu_custom_call.1']
    #allocation4 [shape = 's32[2]{0}', space=sflag, size = 0x8, scoped, tag = 'scoped memory for tpu_custom_call.1']
    #allocation5 [shape = 'u8[4096]{0}', space=vmem, size = 0x1000, scoped, tag = 'input window, operand 1']
    #allocation6 [shape = 's32[2]{0}', space=sflag, size = 0x8, scoped, tag = 'scoped memory for tpu_custom_call.1']
    #allocation7 [shape = 'u8[4096]{0}', space=vmem, size = 0x1000, scoped, tag = 'input window, operand 2']
    #allocation8 [shape = 'u8[32768]{0}', space=vmem, size = 0x8000, scoped, tag = 'input window, operand 3, single buffered']
    #allocation9 [shape = 's32[1]{0}', space=sflag, size = 0x4, scoped, tag = 'scoped memory for tpu_custom_call.1']
    #allocation10 [shape = 'u8[32768]{0}', space=vmem, size = 0x8000, scoped, tag = 'input window, operand 4, single buffered']
    #allocation11 [shape = 'u8[32768]{0}', space=vmem, size = 0x8000, scoped, tag = 'input window, operand 5, single buffered']
    #allocation12 [shape = 's32[1]{0}', space=sflag, size = 0x4, scoped, tag = 'scoped memory for tpu_custom_call.1']
    #allocation13 [shape = 'u8[4096]{0}', space=vmem, size = 0x1000, scoped, tag = 'output window, operand 0']
    #allocation14 [shape = 'u8[4096]{0}', space=vmem, size = 0x1000, scoped, tag = 'output window, operand 1']
    #allocation15 [shape = 's32[2]{0}', space=sflag, size = 0x8, scoped, tag = 'scoped memory for tpu_custom_call.1']
    #allocation16 [shape = 'u8[4096]{0}', space=vmem, size = 0x1000, scoped, tag = 'output window, operand 2']
    %17 = vsyncpa [#allocation3], 0
    %s18 = scalar_lea.sflag [#allocation3], 1
    %19 = vsyncpa %s18, 0
    %20 = vsyncpa [#allocation6], 0
    %s21 = scalar_lea.sflag [#allocation6], 1
    %22 = vsyncpa %s21, 0
    %23 = vsyncpa [#allocation9], 0
    %24 = vsyncpa [#allocation12], 0
    %25 = vsyncpa [#allocation4], 0
    %s26 = scalar_lea.sflag [#allocation4], 1
    %27 = vsyncpa %s26, 0
    %28 = vsyncpa [#allocation15], 0
    %s29 = scalar_lea.sflag [#allocation15], 1
    %30 = vsyncpa %s29, 0
    loop: start=0, step=1, limit=4
    $region2: #{tpu_custom_call.1} parent=1 // loop_pre_header
      _
    $region3: #{tpu_custom_call.1} parent=1 // loop_header
      %s32 = sphi 0, %s36
      %p33 = scmp.ge.s32.totalorder %s32, 4
      %s39 = sphi 0, %s51
      %s40 = sphi 0, %s47
      %s41 = sphi 0, %s39
      %s42 = sphi 0, %s40
      %s43 = sphi 0, %s41
      %s44 = sphi 0, %s42
      %s56 = sphi 0, %s58
      %s59 = sphi 0, %s56
      %s60 = sphi 0, %s59
      %s76 = sphi 0, %s60
      %s84 = sphi 0, %s86
      %s87 = sphi 0, %s84
      %s88 = sphi 0, %s87
      %s104 = sphi 0, %s88
      %s112 = sphi 0, %s114
      %s115 = sphi 0, %s112
      %s116 = sphi 0, %s115
      %s132 = sphi 0, %s116
      %s136 = sphi 0, %s136
      %s138 = sphi 0, %s136
      %s139 = sphi 0, %s138
      %s153 = sphi 0, %s139
      %s157 = sphi 0, %s157
      %s159 = sphi 0, %s157
      %s160 = sphi 0, %s159
      %s174 = sphi 0, %s160
      %s178 = sphi 0, %s178
      %s180 = sphi 0, %s178
      %s181 = sphi 0, %s180
      %s195 = sphi 0, %s181
      %s199 = sphi 0, %s199
      %s201 = sphi 0, %s199
      %s202 = sphi 0, %s201
      %s216 = sphi 0, %s202
      %s220 = sphi 0, %s220
      %s222 = sphi 0, %s220
      %s223 = sphi 0, %s222
      %s237 = sphi 0, %s223
      %s241 = sphi 0, %s241
      %s243 = sphi 0, %s241
      %s244 = sphi 0, %s243
      %s258 = sphi 0, %s244
      %s266 = sphi 0, %s268
      %s269 = sphi 0, %s266
      %s270 = sphi 0, %s269
      %s286 = sphi 0, %s270
      %s294 = sphi 0, %s296
      %s297 = sphi 0, %s294
      %s298 = sphi 0, %s297
      %s314 = sphi 0, %s298
      %s322 = sphi 0, %s324
      %s325 = sphi 0, %s322
      %s326 = sphi 0, %s325
      %s342 = sphi 0, %s326
    $region4: #{tpu_custom_call.1} parent=1 // loop_header_branch
      %35 = sbr.rel (%p33) target = $region8
    $region5: #{tpu_custom_call.1} parent=1 // loop_body
      %s37 = ssub.s32 %s32, 1
      %s38 = ssub.s32 %s32, 2
      %s45 = sadd.s32 1, %s40
      %p46 = scmp.ge.s32.totalorder %s45, 1
      %s47 = scalar_select %p46, 0, %s45
      %s48 = sadd.s32 1, %s39
      %s49 = scalar_select %p46, %s48, %s39
      %p50 = scmp.ge.s32.totalorder %s49, 2
      %s51 = scalar_select %p50, 0, %s49
      %s52 = ssub.s32 %s39, %s51
      %s53 = ssub.s32 %s40, %s47
      %s54 = sor.u32 %s52, %s53
      %p55 = scmp.eq.s32.totalorder %s54, 0
      %s57 = sadd.s32 %s56, 1
      %s58 = scalar_select %p55, %s56, %s57
      %p61 = pneg %p55
      %p62 = scmp.eq.s32.totalorder %s32, 1
      %p63 = por %p61, %p62
      %p64 = scmp.ne.s32.totalorder %s56, %s59
      %p65 = scmp.eq.s32.totalorder %s32, 0
      %p66 = por %p64, %p65
      %p67 = scmp.ne.s32.totalorder %s56, %s59
      %p68 = scmp.eq.s32.totalorder %s37, 1
      %p69 = por %p67, %p68
      %p70 = scmp.ne.s32.totalorder %s59, %s60
      %p71 = scmp.eq.s32.totalorder %s37, 0
      %p72 = por %p70, %p71
      %p73 = scmp.ne.s32.totalorder %s59, %s60
      %p74 = scmp.eq.s32.totalorder %s38, 1
      %p75 = por %p73, %p74
      %p77 = scmp.ne.s32.totalorder %s60, %s76
      %p78 = scmp.eq.s32.totalorder %s38, 0
      %p79 = por %p77, %p78
      %s80 = ssub.s32 %s39, %s51
      %s81 = ssub.s32 %s40, %s47
      %s82 = sor.u32 %s80, %s81
      %p83 = scmp.eq.s32.totalorder %s82, 0
      %s85 = sadd.s32 %s84, 1
      %s86 = scalar_select %p83, %s84, %s85
      %p89 = pneg %p83
      %p90 = scmp.eq.s32.totalorder %s32, 1
      %p91 = por %p89, %p90
      %p92 = scmp.ne.s32.totalorder %s84, %s87
      %p93 = scmp.eq.s32.totalorder %s32, 0
      %p94 = por %p92, %p93
      %p95 = scmp.ne.s32.totalorder %s84, %s87
      %p96 = scmp.eq.s32.totalorder %s37, 1
      %p97 = por %p95, %p96
      %p98 = scmp.ne.s32.totalorder %s87, %s88
      %p99 = scmp.eq.s32.totalorder %s37, 0
      %p100 = por %p98, %p99
      %p101 = scmp.ne.s32.totalorder %s87, %s88
      %p102 = scmp.eq.s32.totalorder %s38, 1
      %p103 = por %p101, %p102
      %p105 = scmp.ne.s32.totalorder %s88, %s104
      %p106 = scmp.eq.s32.totalorder %s38, 0
      %p107 = por %p105, %p106
      %s108 = ssub.s32 %s39, %s51
      %s109 = ssub.s32 %s40, %s47
      %s110 = sor.u32 %s108, %s109
      %p111 = scmp.eq.s32.totalorder %s110, 0
      %s113 = sadd.s32 %s112, 1
      %s114 = scalar_select %p111, %s112, %s113
      %p117 = pneg %p111
      %p118 = scmp.eq.s32.totalorder %s32, 1
      %p119 = por %p117, %p118
      %p120 = scmp.ne.s32.totalorder %s112, %s115
      %p121 = scmp.eq.s32.totalorder %s32, 0
      %p122 = por %p120, %p121
      %p123 = scmp.ne.s32.totalorder %s112, %s115
      %p124 = scmp.eq.s32.totalorder %s37, 1
      %p125 = por %p123, %p124
      %p126 = scmp.ne.s32.totalorder %s115, %s116
      %p127 = scmp.eq.s32.totalorder %s37, 0
      %p128 = por %p126, %p127
      %p129 = scmp.ne.s32.totalorder %s115, %s116
      %p130 = scmp.eq.s32.totalorder %s38, 1
      %p131 = por %p129, %p130
      %p133 = scmp.ne.s32.totalorder %s116, %s132
      %p134 = scmp.eq.s32.totalorder %s38, 0
      %p135 = por %p133, %p134
      %s137 = sadd.s32 %s136, 1
      %p140 = scmp.eq.s32.totalorder %s32, 1
      %p141 = scmp.ne.s32.totalorder %s136, %s138
      %p142 = scmp.eq.s32.totalorder %s32, 0
      %p143 = por %p141, %p142
      %p144 = scmp.ne.s32.totalorder %s136, %s138
      %p145 = scmp.eq.s32.totalorder %s37, 1
      %p146 = por %p144, %p145
      %p147 = scmp.ne.s32.totalorder %s138, %s139
      %p148 = scmp.eq.s32.totalorder %s37, 0
      %p149 = por %p147, %p148
      %p150 = scmp.ne.s32.totalorder %s138, %s139
      %p151 = scmp.eq.s32.totalorder %s38, 1
      %p152 = por %p150, %p151
      %p154 = scmp.ne.s32.totalorder %s139, %s153
      %p155 = scmp.eq.s32.totalorder %s38, 0
      %p156 = por %p154, %p155
      %s158 = sadd.s32 %s157, 1
      %p161 = scmp.eq.s32.totalorder %s32, 1
      %p162 = scmp.ne.s32.totalorder %s157, %s159
      %p163 = scmp.eq.s32.totalorder %s32, 0
      %p164 = por %p162, %p163
      %p165 = scmp.ne.s32.totalorder %s157, %s159
      %p166 = scmp.eq.s32.totalorder %s37, 1
      %p167 = por %p165, %p166
      %p168 = scmp.ne.s32.totalorder %s159, %s160
      %p169 = scmp.eq.s32.totalorder %s37, 0
      %p170 = por %p168, %p169
      %p171 = scmp.ne.s32.totalorder %s159, %s160
      %p172 = scmp.eq.s32.totalorder %s38, 1
      %p173 = por %p171, %p172
      %p175 = scmp.ne.s32.totalorder %s160, %s174
      %p176 = scmp.eq.s32.totalorder %s38, 0
      %p177 = por %p175, %p176
      %s179 = sadd.s32 %s178, 1
      %p182 = scmp.eq.s32.totalorder %s32, 1
      %p183 = scmp.ne.s32.totalorder %s178, %s180
      %p184 = scmp.eq.s32.totalorder %s32, 0
      %p185 = por %p183, %p184
      %p186 = scmp.ne.s32.totalorder %s178, %s180
      %p187 = scmp.eq.s32.totalorder %s37, 1
      %p188 = por %p186, %p187
      %p189 = scmp.ne.s32.totalorder %s180, %s181
      %p190 = scmp.eq.s32.totalorder %s37, 0
      %p191 = por %p189, %p190
      %p192 = scmp.ne.s32.totalorder %s180, %s181
      %p193 = scmp.eq.s32.totalorder %s38, 1
      %p194 = por %p192, %p193
      %p196 = scmp.ne.s32.totalorder %s181, %s195
      %p197 = scmp.eq.s32.totalorder %s38, 0
      %p198 = por %p196, %p197
      %s200 = sadd.s32 %s199, 1
      %p203 = scmp.eq.s32.totalorder %s32, 1
      %p204 = scmp.ne.s32.totalorder %s199, %s201
      %p205 = scmp.eq.s32.totalorder %s32, 0
      %p206 = por %p204, %p205
      %p207 = scmp.ne.s32.totalorder %s199, %s201
      %p208 = scmp.eq.s32.totalorder %s37, 1
      %p209 = por %p207, %p208
      %p210 = scmp.ne.s32.totalorder %s201, %s202
      %p211 = scmp.eq.s32.totalorder %s37, 0
      %p212 = por %p210, %p211
      %p213 = scmp.ne.s32.totalorder %s201, %s202
      %p214 = scmp.eq.s32.totalorder %s38, 1
      %p215 = por %p213, %p214
      %p217 = scmp.ne.s32.totalorder %s202, %s216
      %p218 = scmp.eq.s32.totalorder %s38, 0
      %p219 = por %p217, %p218
      %s221 = sadd.s32 %s220, 1
      %p224 = scmp.eq.s32.totalorder %s32, 1
      %p225 = scmp.ne.s32.totalorder %s220, %s222
      %p226 = scmp.eq.s32.totalorder %s32, 0
      %p227 = por %p225, %p226
      %p228 = scmp.ne.s32.totalorder %s220, %s222
      %p229 = scmp.eq.s32.totalorder %s37, 1
      %p230 = por %p228, %p229
      %p231 = scmp.ne.s32.totalorder %s222, %s223
      %p232 = scmp.eq.s32.totalorder %s37, 0
      %p233 = por %p231, %p232
      %p234 = scmp.ne.s32.totalorder %s222, %s223
      %p235 = scmp.eq.s32.totalorder %s38, 1
      %p236 = por %p234, %p235
      %p238 = scmp.ne.s32.totalorder %s223, %s237
      %p239 = scmp.eq.s32.totalorder %s38, 0
      %p240 = por %p238, %p239
      %s242 = sadd.s32 %s241, 1
      %p245 = scmp.eq.s32.totalorder %s32, 1
      %p246 = scmp.ne.s32.totalorder %s241, %s243
      %p247 = scmp.eq.s32.totalorder %s32, 0
      %p248 = por %p246, %p247
      %p249 = scmp.ne.s32.totalorder %s241, %s243
      %p250 = scmp.eq.s32.totalorder %s37, 1
      %p251 = por %p249, %p250
      %p252 = scmp.ne.s32.totalorder %s243, %s244
      %p253 = scmp.eq.s32.totalorder %s37, 0
      %p254 = por %p252, %p253
      %p255 = scmp.ne.s32.totalorder %s243, %s244
      %p256 = scmp.eq.s32.totalorder %s38, 1
      %p257 = por %p255, %p256
      %p259 = scmp.ne.s32.totalorder %s244, %s258
      %p260 = scmp.eq.s32.totalorder %s38, 0
      %p261 = por %p259, %p260
      %s262 = ssub.s32 %s39, %s51
      %s263 = ssub.s32 %s40, %s47
      %s264 = sor.u32 %s262, %s263
      %p265 = scmp.eq.s32.totalorder %s264, 0
      %s267 = sadd.s32 %s266, 1
      %s268 = scalar_select %p265, %s266, %s267
      %p271 = pneg %p265
      %p272 = scmp.eq.s32.totalorder %s32, 1
      %p273 = por %p271, %p272
      %p274 = scmp.ne.s32.totalorder %s266, %s269
      %p275 = scmp.eq.s32.totalorder %s32, 0
      %p276 = por %p274, %p275
      %p277 = scmp.ne.s32.totalorder %s266, %s269
      %p278 = scmp.eq.s32.totalorder %s37, 1
      %p279 = por %p277, %p278
      %p280 = scmp.ne.s32.totalorder %s269, %s270
      %p281 = scmp.eq.s32.totalorder %s37, 0
      %p282 = por %p280, %p281
      %p283 = scmp.ne.s32.totalorder %s269, %s270
      %p284 = scmp.eq.s32.totalorder %s38, 1
      %p285 = por %p283, %p284
      %p287 = scmp.ne.s32.totalorder %s270, %s286
      %p288 = scmp.eq.s32.totalorder %s38, 0
      %p289 = por %p287, %p288
      %s290 = ssub.s32 %s39, %s51
      %s291 = ssub.s32 %s40, %s47
      %s292 = sor.u32 %s290, %s291
      %p293 = scmp.eq.s32.totalorder %s292, 0
      %s295 = sadd.s32 %s294, 1
      %s296 = scalar_select %p293, %s294, %s295
      %p299 = pneg %p293
      %p300 = scmp.eq.s32.totalorder %s32, 1
      %p301 = por %p299, %p300
      %p302 = scmp.ne.s32.totalorder %s294, %s297
      %p303 = scmp.eq.s32.totalorder %s32, 0
      %p304 = por %p302, %p303
      %p305 = scmp.ne.s32.totalorder %s294, %s297
      %p306 = scmp.eq.s32.totalorder %s37, 1
      %p307 = por %p305, %p306
      %p308 = scmp.ne.s32.totalorder %s297, %s298
      %p309 = scmp.eq.s32.totalorder %s37, 0
      %p310 = por %p308, %p309
      %p311 = scmp.ne.s32.totalorder %s297, %s298
      %p312 = scmp.eq.s32.totalorder %s38, 1
      %p313 = por %p311, %p312
      %p315 = scmp.ne.s32.totalorder %s298, %s314
      %p316 = scmp.eq.s32.totalorder %s38, 0
      %p317 = por %p315, %p316
      %s318 = ssub.s32 %s39, %s51
      %s319 = ssub.s32 %s40, %s47
      %s320 = sor.u32 %s318, %s319
      %p321 = scmp.eq.s32.totalorder %s320, 0
      %s323 = sadd.s32 %s322, 1
      %s324 = scalar_select %p321, %s322, %s323
      %p327 = pneg %p321
      %p328 = scmp.eq.s32.totalorder %s32, 1
      %p329 = por %p327, %p328
      %p330 = scmp.ne.s32.totalorder %s322, %s325
      %p331 = scmp.eq.s32.totalorder %s32, 0
      %p332 = por %p330, %p331
      %p333 = scmp.ne.s32.totalorder %s322, %s325
      %p334 = scmp.eq.s32.totalorder %s37, 1
      %p335 = por %p333, %p334
      %p336 = scmp.ne.s32.totalorder %s325, %s326
      %p337 = scmp.eq.s32.totalorder %s37, 0
      %p338 = por %p336, %p337
      %p339 = scmp.ne.s32.totalorder %s325, %s326
      %p340 = scmp.eq.s32.totalorder %s38, 1
      %p341 = por %p339, %p340
      %p343 = scmp.ne.s32.totalorder %s326, %s342
      %p344 = scmp.eq.s32.totalorder %s38, 0
      %p345 = por %p343, %p344
      %p346 = scmp.le.s32.totalorder 1, %s32
      %p347 = scmp.lt.s32.totalorder %s32, 3
      %p348 = pnand %p346, %p347
      %p349 = pneg %p348
      // Predicated region
      $region9: #{tpu_custom_call.1} parent=5 // pred_check
        _
      $region10: #{tpu_custom_call.1} parent=5 // pred_check_branch
        %351 = sbr.rel (%p348) target = $region12
      $region11: #{tpu_custom_call.1} parent=5 // pred_region
        %s352 = ssub.s32 %s32, 1
        // Predicated region
        $region13: #{tpu_custom_call.1} parent=11 // pred_check
          %p353 = pneg %p149
        $region14: #{tpu_custom_call.1} parent=11 // pred_check_branch
          %355 = sbr.rel (%p353) target = $region16
        $region15: #{tpu_custom_call.1} parent=11 // pred_region
          %357 = vsyncadd [#allocation9], 0
          %s358 = sshll.u32 %s3, 4
          %s359 = int_to_ptr.hbm [resolvable:$true] %s358
          %s360 = sshll.u32 [#allocation8], 4
          %s361 = int_to_ptr.vmem [resolvable:$true] %s360
          %366 = dma.hbm_to_vmem [thread:$0]  %s359, 1024, %s361, [#allocation9], 64, 64, 4
        $region16: #{tpu_custom_call.1} parent=11 // pred_fallthru
          _
        // Predicated region
        $region17: #{tpu_custom_call.1} parent=11 // pred_check
          %p367 = pneg %p170
        $region18: #{tpu_custom_call.1} parent=11 // pred_check_branch
          %369 = sbr.rel (%p367) target = $region20
        $region19: #{tpu_custom_call.1} parent=11 // pred_region
          %371 = vsyncadd [#allocation9], 0
          %s372 = sshll.u32 %s4, 4
          %s373 = int_to_ptr.hbm [resolvable:$true] %s372
          %s374 = sshll.u32 [#allocation10], 4
          %s375 = int_to_ptr.vmem [resolvable:$true] %s374
          %380 = dma.hbm_to_vmem [thread:$0]  %s373, 1024, %s375, [#allocation9], 64, 64, 4
        $region20: #{tpu_custom_call.1} parent=11 // pred_fallthru
          _
        // Predicated region
        $region21: #{tpu_custom_call.1} parent=11 // pred_check
          %p381 = pneg %p191
        $region22: #{tpu_custom_call.1} parent=11 // pred_check_branch
          %383 = sbr.rel (%p381) target = $region24
        $region23: #{tpu_custom_call.1} parent=11 // pred_region
          %385 = vsyncadd [#allocation12], 0
          %s386 = sshll.u32 %s5, 4
          %s387 = int_to_ptr.hbm [resolvable:$true] %s386
          %s388 = sshll.u32 [#allocation11], 4
          %s389 = int_to_ptr.vmem [resolvable:$true] %s388
          %394 = dma.hbm_to_vmem [thread:$0]  %s387, 1024, %s389, [#allocation12], 64, 64, 4
        $region24: #{tpu_custom_call.1} parent=11 // pred_fallthru
          _
        // Predicated region
        $region25: #{tpu_custom_call.1} parent=11 // pred_check
          %p395 = pneg %p212
        $region26: #{tpu_custom_call.1} parent=11 // pred_check_branch
          %397 = sbr.rel (%p395) target = $region28
        $region27: #{tpu_custom_call.1} parent=11 // pred_region
          _
        $region28: #{tpu_custom_call.1} parent=11 // pred_fallthru
          _
        // Predicated region
        $region29: #{tpu_custom_call.1} parent=11 // pred_check
          %p398 = pneg %p233
        $region30: #{tpu_custom_call.1} parent=11 // pred_check_branch
          %400 = sbr.rel (%p398) target = $region32
        $region31: #{tpu_custom_call.1} parent=11 // pred_region
          _
        $region32: #{tpu_custom_call.1} parent=11 // pred_fallthru
          _
        // Predicated region
        $region33: #{tpu_custom_call.1} parent=11 // pred_check
          %p401 = pneg %p254
        $region34: #{tpu_custom_call.1} parent=11 // pred_check_branch
          %403 = sbr.rel (%p401) target = $region36
        $region35: #{tpu_custom_call.1} parent=11 // pred_region
          _
        $region36: #{tpu_custom_call.1} parent=11 // pred_fallthru
          _
      $region12: #{tpu_custom_call.1} parent=5 // pred_fallthru
        _
      %p404 = scmp.lt.s32.totalorder %s32, 2
      // Predicated region
      $region37: #{tpu_custom_call.1} parent=5 // pred_check
        %p405 = pneg %p404
      $region38: #{tpu_custom_call.1} parent=5 // pred_check_branch
        %407 = sbr.rel (%p405) target = $region40
      $region39: #{tpu_custom_call.1} parent=5 // pred_region
        // Predicated region
        $region41: #{tpu_custom_call.1} parent=39 // pred_check
          %p408 = pneg %p66
        $region42: #{tpu_custom_call.1} parent=39 // pred_check_branch
          %410 = sbr.rel (%p408) target = $region44
        $region43: #{tpu_custom_call.1} parent=39 // pred_region
          %s411 = sand.u32 %s56, 1
          %s412 = scalar_lea.sflag [#allocation3], %s411
          %s413 = sand.u32 %s56, 1
          %s414 = smul.addr %s413, 4
          %s415 = scalar_lea.vmem [#allocation2], %s414
          %417 = vsyncadd %s412, 0
          %s418 = sadd.s32 %s40, %s39
          %s419 = smul.addr %s418, 4
          %s420 = scalar_lea.hbm %s0, %s419
          %s422 = sshll.u32 %s420, 4
          %s423 = int_to_ptr.hbm [resolvable:$true] %s422
          %s424 = sshll.u32 %s415, 4
          %s425 = int_to_ptr.vmem [resolvable:$true] %s424
          %427 = dma.hbm_to_vmem [thread:$0]  %s423, 64, %s425, %s412
        $region44: #{tpu_custom_call.1} parent=39 // pred_fallthru
          _
        // Predicated region
        $region45: #{tpu_custom_call.1} parent=39 // pred_check
          %p428 = pneg %p94
        $region46: #{tpu_custom_call.1} parent=39 // pred_check_branch
          %430 = sbr.rel (%p428) target = $region48
        $region47: #{tpu_custom_call.1} parent=39 // pred_region
          %s431 = sand.u32 %s32, 1
          %s432 = scalar_lea.sflag [#allocation6], %s431
          %s433 = sand.u32 %s84, 1
          %s434 = smul.addr %s433, 4
          %s435 = scalar_lea.vmem [#allocation5], %s434
          %437 = vsyncadd %s432, 0
          %s438 = sadd.s32 %s40, %s39
          %s439 = smul.addr %s438, 4
          %s440 = scalar_lea.hbm %s1, %s439
          %s442 = sshll.u32 %s440, 4
          %s443 = int_to_ptr.hbm [resolvable:$true] %s442
          %s444 = sshll.u32 %s435, 4
          %s445 = int_to_ptr.vmem [resolvable:$true] %s444
          %447 = dma.hbm_to_vmem [thread:$0]  %s443, 64, %s445, %s432
        $region48: #{tpu_custom_call.1} parent=39 // pred_fallthru
          _
        // Predicated region
        $region49: #{tpu_custom_call.1} parent=39 // pred_check
          %p448 = pneg %p122
        $region50: #{tpu_custom_call.1} parent=39 // pred_check_branch
          %450 = sbr.rel (%p448) target = $region52
        $region51: #{tpu_custom_call.1} parent=39 // pred_region
          %s451 = sand.u32 %s32, 1
          %s452 = scalar_lea.sflag [#allocation6], %s451
          %s453 = sand.u32 %s112, 1
          %s454 = smul.addr %s453, 4
          %s455 = scalar_lea.vmem [#allocation7], %s454
          %457 = vsyncadd %s452, 0
          %s458 = sadd.s32 %s40, %s39
          %s459 = smul.addr %s458, 4
          %s460 = scalar_lea.hbm %s2, %s459
          %s462 = sshll.u32 %s460, 4
          %s463 = int_to_ptr.hbm [resolvable:$true] %s462
          %s464 = sshll.u32 %s455, 4
          %s465 = int_to_ptr.vmem [resolvable:$true] %s464
          %467 = dma.hbm_to_vmem [thread:$0]  %s463, 64, %s465, %s452
        $region52: #{tpu_custom_call.1} parent=39 // pred_fallthru
          _
      $region40: #{tpu_custom_call.1} parent=5 // pred_fallthru
        _
      %p468 = scmp.le.s32.totalorder 1, %s32
      %p469 = scmp.lt.s32.totalorder %s32, 3
      %p470 = pnand %p468, %p469
      %p471 = pneg %p470
      // Predicated region
      $region53: #{tpu_custom_call.1} parent=5 // pred_check
        _
      $region54: #{tpu_custom_call.1} parent=5 // pred_check_branch
        %473 = sbr.rel (%p470) target = $region56
      $region55: #{tpu_custom_call.1} parent=5 // pred_region
        %s474 = ssub.s32 %s32, 1
        %s475 = sand.u32 %s59, 1
        %s476 = scalar_lea.sflag [#allocation3], %s475
        %s477 = sand.u32 %s59, 1
        %s478 = smul.addr %s477, 4
        %s479 = scalar_lea.vmem [#allocation2], %s478
        // Predicated region
        $region57: #{tpu_custom_call.1} parent=55 // pred_check
          %p480 = pneg %p72
        $region58: #{tpu_custom_call.1} parent=55 // pred_check_branch
          %482 = sbr.rel (%p480) target = $region60
        $region59: #{tpu_custom_call.1} parent=55 // pred_region
          %484 = dma.done %s476, 64
        $region60: #{tpu_custom_call.1} parent=55 // pred_fallthru
          _
        %s485 = sand.u32 %s37, 1
        %s486 = scalar_lea.sflag [#allocation6], %s485
        %s487 = sand.u32 %s87, 1
        %s488 = smul.addr %s487, 4
        %s489 = scalar_lea.vmem [#allocation5], %s488
        // Predicated region
        $region61: #{tpu_custom_call.1} parent=55 // pred_check
          %p490 = pneg %p100
        $region62: #{tpu_custom_call.1} parent=55 // pred_check_branch
          %492 = sbr.rel (%p490) target = $region64
        $region63: #{tpu_custom_call.1} parent=55 // pred_region
          %494 = dma.done %s486, 64
        $region64: #{tpu_custom_call.1} parent=55 // pred_fallthru
          _
        %s495 = sand.u32 %s37, 1
        %s496 = scalar_lea.sflag [#allocation6], %s495
        %s497 = sand.u32 %s115, 1
        %s498 = smul.addr %s497, 4
        %s499 = scalar_lea.vmem [#allocation7], %s498
        // Predicated region
        $region65: #{tpu_custom_call.1} parent=55 // pred_check
          %p500 = pneg %p128
        $region66: #{tpu_custom_call.1} parent=55 // pred_check_branch
          %502 = sbr.rel (%p500) target = $region68
        $region67: #{tpu_custom_call.1} parent=55 // pred_region
          %504 = dma.done %s496, 64
        $region68: #{tpu_custom_call.1} parent=55 // pred_fallthru
          _
        // Predicated region
        $region69: #{tpu_custom_call.1} parent=55 // pred_check
          %p505 = pneg %p149
        $region70: #{tpu_custom_call.1} parent=55 // pred_check_branch
          %507 = sbr.rel (%p505) target = $region72
        $region71: #{tpu_custom_call.1} parent=55 // pred_region
          %509 = dma.done [#allocation9], 1024
        $region72: #{tpu_custom_call.1} parent=55 // pred_fallthru
          _
        // Predicated region
        $region73: #{tpu_custom_call.1} parent=55 // pred_check
          %p510 = pneg %p170
        $region74: #{tpu_custom_call.1} parent=55 // pred_check_branch
          %512 = sbr.rel (%p510) target = $region76
        $region75: #{tpu_custom_call.1} parent=55 // pred_region
          %514 = dma.done [#allocation9], 1024
        $region76: #{tpu_custom_call.1} parent=55 // pred_fallthru
          _
        // Predicated region
        $region77: #{tpu_custom_call.1} parent=55 // pred_check
          %p515 = pneg %p191
        $region78: #{tpu_custom_call.1} parent=55 // pred_check_branch
          %517 = sbr.rel (%p515) target = $region80
        $region79: #{tpu_custom_call.1} parent=55 // pred_region
          %519 = dma.done [#allocation12], 1024
        $region80: #{tpu_custom_call.1} parent=55 // pred_fallthru
          _
        %s520 = sand.u32 %s59, 1
        %s521 = scalar_lea.sflag [#allocation3], %s520
        %s522 = sand.u32 %s59, 1
        %s523 = smul.addr %s522, 4
        %s524 = scalar_lea.vmem [#allocation2], %s523
        %p525 = pneg %p72
        %p526 = pneg %p69
        %s527 = sand.u32 %s37, 1
        %s528 = scalar_lea.sflag [#allocation6], %s527
        %s529 = sand.u32 %s87, 1
        %s530 = smul.addr %s529, 4
        %s531 = scalar_lea.vmem [#allocation5], %s530
        %p532 = pneg %p100
        %p533 = pneg %p97
        %s534 = sand.u32 %s37, 1
        %s535 = scalar_lea.sflag [#allocation6], %s534
        %s536 = sand.u32 %s115, 1
        %s537 = smul.addr %s536, 4
        %s538 = scalar_lea.vmem [#allocation7], %s537
        %p539 = pneg %p128
        %p540 = pneg %p125
        %p541 = pneg %p149
        %p542 = pneg %p146
        %p543 = pneg %p170
        %p544 = pneg %p167
        %p545 = pneg %p191
        %p546 = pneg %p188
        %p547 = pneg %p212
        %p548 = pneg %p209
        %p549 = pneg %p233
        %p550 = pneg %p230
        %p551 = pneg %p254
        %p552 = pneg %p251
        %p553 = pneg %p282
        %p554 = pneg %p279
        %s555 = sand.u32 %s269, 1
        %s556 = scalar_lea.sflag [#allocation4], %s555
        %s557 = sand.u32 %s269, 1
        %s558 = smul.addr %s557, 4
        %s559 = scalar_lea.vmem [#allocation13], %s558
        %p560 = pneg %p310
        %p561 = pneg %p307
        %s562 = sand.u32 %s37, 1
        %s563 = scalar_lea.sflag [#allocation15], %s562
        %s564 = sand.u32 %s297, 1
        %s565 = smul.addr %s564, 4
        %s566 = scalar_lea.vmem [#allocation14], %s565
        %p567 = pneg %p338
        %p568 = pneg %p335
        %s569 = sand.u32 %s37, 1
        %s570 = scalar_lea.sflag [#allocation15], %s569
        %s571 = sand.u32 %s325, 1
        %s572 = smul.addr %s571, 4
        %s573 = scalar_lea.vmem [#allocation16], %s572
        %v574 = vld [vmem:[%s479] sm:$0xf]
        %v575 = vld [vmem:[#allocation8] sm:$0xf]
        %v576 = vld [vmem:[#allocation8 + $0x4] sm:$0xf]
        %v577 = vld [vmem:[#allocation8 + $0x8] sm:$0xf]
        %v578 = vld [vmem:[#allocation8 + $0xc] sm:$0xf]
        %v579 = vld [vmem:[#allocation8 + $0x10] sm:$0xf]
        %v580 = vld [vmem:[#allocation8 + $0x14] sm:$0xf]
        %v581 = vld [vmem:[#allocation8 + $0x18] sm:$0xf]
        %v582 = vld [vmem:[#allocation8 + $0x1c] sm:$0xf]
        %v583 = vld [vmem:[#allocation8 + $0x20] sm:$0xf]
        %v584 = vld [vmem:[#allocation8 + $0x24] sm:$0xf]
        %v585 = vld [vmem:[#allocation8 + $0x28] sm:$0xf]
        %v586 = vld [vmem:[#allocation8 + $0x2c] sm:$0xf]
        %v587 = vld [vmem:[#allocation8 + $0x30] sm:$0xf]
        %v588 = vld [vmem:[#allocation8 + $0x34] sm:$0xf]
        %v589 = vld [vmem:[#allocation8 + $0x38] sm:$0xf]
        %v590 = vld [vmem:[#allocation8 + $0x3c] sm:$0xf]
        %v591 = vld [vmem:[%s6] sm:$0x1]
        %v593 = vperm.slane %v591, 0
        %v611 = vunpack.c.l.b16 %v575
        %v612 = vunpack.c.l.b16 %v576
        %v613 = vunpack.c.l.b16 %v577
        %v614 = vunpack.c.l.b16 %v578
        %v615 = vunpack.c.l.b16 %v579
        %v616 = vunpack.c.l.b16 %v580
        %v617 = vunpack.c.l.b16 %v581
        %v618 = vunpack.c.l.b16 %v582
        %v619 = vunpack.c.l.b16 %v583
        %v620 = vunpack.c.l.b16 %v584
        %v621 = vunpack.c.l.b16 %v585
        %v622 = vunpack.c.l.b16 %v586
        %v623 = vunpack.c.l.b16 %v587
        %v624 = vunpack.c.l.b16 %v588
        %v625 = vunpack.c.l.b16 %v589
        %v626 = vunpack.c.l.b16 %v590
        %v627 = vpack.c.b16 %v612, %v611
        %v628 = vpack.c.b16 %v614, %v613
        %v629 = vpack.c.b16 %v616, %v615
        %v630 = vpack.c.b16 %v618, %v617
        %v631 = vpack.c.b16 %v620, %v619
        %v632 = vpack.c.b16 %v622, %v621
        %v633 = vpack.c.b16 %v624, %v623
        %v634 = vpack.c.b16 %v626, %v625
        %643 = vmatpush.bf16.msra.mxu0 %v634
        %644 = vmatpush.bf16.msra.mxu0 %v633
        %645 = vmatpush.bf16.msra.mxu0 %v632
        %646 = vmatpush.bf16.msra.mxu0 %v631
        %647 = vmatpush.bf16.msra.mxu0 %v630
        %648 = vmatpush.bf16.msra.mxu0 %v629
        %649 = vmatpush.bf16.msra.mxu0 %v628
        %650 = vmatpush.bf16.msra.mxu0 %v627
        %651 = vmatmul.bf16.gmra.mxu0 %v574
        %v652 = vpop.f32.mrf.mxu0
        %v653 = vadd.f32 %v593, %v652
        %v654 = vpop.f32.mrf.mxu0
        %655 = vdwg.mxu0
        %v656 = vpack.c.bf16 %v653, %v653
        %657 = vst [vmem:[%s559] sm:$0xf] %v656
        %v658 = vld [vmem:[%s489] sm:$0xf]
        %v659 = vld [vmem:[#allocation10] sm:$0xf]
        %v660 = vld [vmem:[#allocation10 + $0x4] sm:$0xf]
        %v661 = vld [vmem:[#allocation10 + $0x8] sm:$0xf]
        %v662 = vld [vmem:[#allocation10 + $0xc] sm:$0xf]
        %v663 = vld [vmem:[#allocation10 + $0x10] sm:$0xf]
        %v664 = vld [vmem:[#allocation10 + $0x14] sm:$0xf]
        %v665 = vld [vmem:[#allocation10 + $0x18] sm:$0xf]
        %v666 = vld [vmem:[#allocation10 + $0x1c] sm:$0xf]
        %v667 = vld [vmem:[#allocation10 + $0x20] sm:$0xf]
        %v668 = vld [vmem:[#allocation10 + $0x24] sm:$0xf]
        %v669 = vld [vmem:[#allocation10 + $0x28] sm:$0xf]
        %v670 = vld [vmem:[#allocation10 + $0x2c] sm:$0xf]
        %v671 = vld [vmem:[#allocation10 + $0x30] sm:$0xf]
        %v672 = vld [vmem:[#allocation10 + $0x34] sm:$0xf]
        %v673 = vld [vmem:[#allocation10 + $0x38] sm:$0xf]
        %v674 = vld [vmem:[#allocation10 + $0x3c] sm:$0xf]
        %v675 = vld [vmem:[%s7] sm:$0x1]
        %v677 = vperm.slane %v675, 0
        %v695 = vunpack.c.l.b16 %v659
        %v696 = vunpack.c.l.b16 %v660
        %v697 = vunpack.c.l.b16 %v661
        %v698 = vunpack.c.l.b16 %v662
        %v699 = vunpack.c.l.b16 %v663
        %v700 = vunpack.c.l.b16 %v664
        %v701 = vunpack.c.l.b16 %v665
        %v702 = vunpack.c.l.b16 %v666
        %v703 = vunpack.c.l.b16 %v667
        %v704 = vunpack.c.l.b16 %v668
        %v705 = vunpack.c.l.b16 %v669
        %v706 = vunpack.c.l.b16 %v670
        %v707 = vunpack.c.l.b16 %v671
        %v708 = vunpack.c.l.b16 %v672
        %v709 = vunpack.c.l.b16 %v673
        %v710 = vunpack.c.l.b16 %v674
        %v711 = vpack.c.b16 %v696, %v695
        %v712 = vpack.c.b16 %v698, %v697
        %v713 = vpack.c.b16 %v700, %v699
        %v714 = vpack.c.b16 %v702, %v701
        %v715 = vpack.c.b16 %v704, %v703
        %v716 = vpack.c.b16 %v706, %v705
        %v717 = vpack.c.b16 %v708, %v707
        %v718 = vpack.c.b16 %v710, %v709
        %727 = vmatpush.bf16.msra.mxu0 %v718
        %728 = vmatpush.bf16.msra.mxu0 %v717
        %729 = vmatpush.bf16.msra.mxu0 %v716
        %730 = vmatpush.bf16.msra.mxu0 %v715
        %731 = vmatpush.bf16.msra.mxu0 %v714
        %732 = vmatpush.bf16.msra.mxu0 %v713
        %733 = vmatpush.bf16.msra.mxu0 %v712
        %734 = vmatpush.bf16.msra.mxu0 %v711
        %735 = vmatmul.bf16.gmra.mxu0 %v658
        %v736 = vpop.f32.mrf.mxu0
        %v737 = vadd.f32 %v677, %v736
        %v738 = vpop.f32.mrf.mxu0
        %739 = vdwg.mxu0
        %v740 = vpack.c.bf16 %v737, %v737
        %741 = vst [vmem:[%s566] sm:$0xf] %v740
        %v742 = vld [vmem:[%s499] sm:$0xf]
        %v743 = vld [vmem:[#allocation11] sm:$0xf]
        %v744 = vld [vmem:[#allocation11 + $0x4] sm:$0xf]
        %v745 = vld [vmem:[#allocation11 + $0x8] sm:$0xf]
        %v746 = vld [vmem:[#allocation11 + $0xc] sm:$0xf]
        %v747 = vld [vmem:[#allocation11 + $0x10] sm:$0xf]
        %v748 = vld [vmem:[#allocation11 + $0x14] sm:$0xf]
        %v749 = vld [vmem:[#allocation11 + $0x18] sm:$0xf]
        %v750 = vld [vmem:[#allocation11 + $0x1c] sm:$0xf]
        %v751 = vld [vmem:[#allocation11 + $0x20] sm:$0xf]
        %v752 = vld [vmem:[#allocation11 + $0x24] sm:$0xf]
        %v753 = vld [vmem:[#allocation11 + $0x28] sm:$0xf]
        %v754 = vld [vmem:[#allocation11 + $0x2c] sm:$0xf]
        %v755 = vld [vmem:[#allocation11 + $0x30] sm:$0xf]
        %v756 = vld [vmem:[#allocation11 + $0x34] sm:$0xf]
        %v757 = vld [vmem:[#allocation11 + $0x38] sm:$0xf]
        %v758 = vld [vmem:[#allocation11 + $0x3c] sm:$0xf]
        %v759 = vld [vmem:[%s8] sm:$0x1]
        %v761 = vperm.slane %v759, 0
        %v779 = vunpack.c.l.b16 %v743
        %v780 = vunpack.c.l.b16 %v744
        %v781 = vunpack.c.l.b16 %v745
        %v782 = vunpack.c.l.b16 %v746
        %v783 = vunpack.c.l.b16 %v747
        %v784 = vunpack.c.l.b16 %v748
        %v785 = vunpack.c.l.b16 %v749
        %v786 = vunpack.c.l.b16 %v750
        %v787 = vunpack.c.l.b16 %v751
        %v788 = vunpack.c.l.b16 %v752
        %v789 = vunpack.c.l.b16 %v753
        %v790 = vunpack.c.l.b16 %v754
        %v791 = vunpack.c.l.b16 %v755
        %v792 = vunpack.c.l.b16 %v756
        %v793 = vunpack.c.l.b16 %v757
        %v794 = vunpack.c.l.b16 %v758
        %v795 = vpack.c.b16 %v780, %v779
        %v796 = vpack.c.b16 %v782, %v781
        %v797 = vpack.c.b16 %v784, %v783
        %v798 = vpack.c.b16 %v786, %v785
        %v799 = vpack.c.b16 %v788, %v787
        %v800 = vpack.c.b16 %v790, %v789
        %v801 = vpack.c.b16 %v792, %v791
        %v802 = vpack.c.b16 %v794, %v793
        %811 = vmatpush.bf16.msra.mxu0 %v802
        %812 = vmatpush.bf16.msra.mxu0 %v801
        %813 = vmatpush.bf16.msra.mxu0 %v800
        %814 = vmatpush.bf16.msra.mxu0 %v799
        %815 = vmatpush.bf16.msra.mxu0 %v798
        %816 = vmatpush.bf16.msra.mxu0 %v797
        %817 = vmatpush.bf16.msra.mxu0 %v796
        %818 = vmatpush.bf16.msra.mxu0 %v795
        %819 = vmatmul.bf16.gmra.mxu0 %v742
        %v820 = vpop.f32.mrf.mxu0
        %v821 = vadd.f32 %v761, %v820
        %v822 = vpop.f32.mrf.mxu0
        %823 = vdwg.mxu0
        %v824 = vpack.c.bf16 %v821, %v821
        %825 = vst [vmem:[%s573] sm:$0xf] %v824
        %s826 = sand.u32 %s269, 1
        %s827 = scalar_lea.sflag [#allocation4], %s826
        %s828 = sand.u32 %s269, 1
        %s829 = smul.addr %s828, 4
        %s830 = scalar_lea.vmem [#allocation13], %s829
        %s831 = sand.u32 %s37, 1
        %s832 = scalar_lea.sflag [#allocation15], %s831
        %s833 = sand.u32 %s297, 1
        %s834 = smul.addr %s833, 4
        %s835 = scalar_lea.vmem [#allocation14], %s834
        %s836 = sand.u32 %s37, 1
        %s837 = scalar_lea.sflag [#allocation15], %s836
        %s838 = sand.u32 %s325, 1
        %s839 = smul.addr %s838, 4
        %s840 = scalar_lea.vmem [#allocation16], %s839
        // Predicated region
        $region81: #{tpu_custom_call.1} parent=55 // pred_check
          %p841 = pneg %p279
        $region82: #{tpu_custom_call.1} parent=55 // pred_check_branch
          %843 = sbr.rel (%p841) target = $region84
        $region83: #{tpu_custom_call.1} parent=55 // pred_region
          %845 = vsyncadd %s827, 0
          %s846 = sadd.s32 %s42, %s41
          %s847 = smul.addr %s846, 4
          %s848 = scalar_lea.hbm %s9, %s847
          %s850 = sshll.u32 %s830, 4
          %s851 = int_to_ptr.vmem [resolvable:$true] %s850
          %s852 = sshll.u32 %s848, 4
          %s853 = int_to_ptr.hbm [resolvable:$true] %s852
          %855 = dma.vmem_to_hbm [thread:$0]  %s851, 64, %s853, %s827
        $region84: #{tpu_custom_call.1} parent=55 // pred_fallthru
          _
        // Predicated region
        $region85: #{tpu_custom_call.1} parent=55 // pred_check
          %p856 = pneg %p307
        $region86: #{tpu_custom_call.1} parent=55 // pred_check_branch
          %858 = sbr.rel (%p856) target = $region88
        $region87: #{tpu_custom_call.1} parent=55 // pred_region
          %860 = vsyncadd %s832, 0
          %s861 = sadd.s32 %s42, %s41
          %s862 = smul.addr %s861, 4
          %s863 = scalar_lea.hbm %s10, %s862
          %s865 = sshll.u32 %s835, 4
          %s866 = int_to_ptr.vmem [resolvable:$true] %s865
          %s867 = sshll.u32 %s863, 4
          %s868 = int_to_ptr.hbm [resolvable:$true] %s867
          %870 = dma.vmem_to_hbm [thread:$0]  %s866, 64, %s868, %s832
        $region88: #{tpu_custom_call.1} parent=55 // pred_fallthru
          _
        // Predicated region
        $region89: #{tpu_custom_call.1} parent=55 // pred_check
          %p871 = pneg %p335
        $region90: #{tpu_custom_call.1} parent=55 // pred_check_branch
          %873 = sbr.rel (%p871) target = $region92
        $region91: #{tpu_custom_call.1} parent=55 // pred_region
          %875 = vsyncadd %s837, 0
          %s876 = sadd.s32 %s42, %s41
          %s877 = smul.addr %s876, 4
          %s878 = scalar_lea.hbm %s11, %s877
          %s880 = sshll.u32 %s840, 4
          %s881 = int_to_ptr.vmem [resolvable:$true] %s880
          %s882 = sshll.u32 %s878, 4
          %s883 = int_to_ptr.hbm [resolvable:$true] %s882
          %885 = dma.vmem_to_hbm [thread:$0]  %s881, 64, %s883, %s837
        $region92: #{tpu_custom_call.1} parent=55 // pred_fallthru
          _
      $region56: #{tpu_custom_call.1} parent=5 // pred_fallthru
        _
      %p886 = scmp.le.s32.totalorder 2, %s32
      // Predicated region
      $region93: #{tpu_custom_call.1} parent=5 // pred_check
        %p887 = pneg %p886
      $region94: #{tpu_custom_call.1} parent=5 // pred_check_branch
        %889 = sbr.rel (%p887) target = $region96
      $region95: #{tpu_custom_call.1} parent=5 // pred_region
        %s890 = ssub.s32 %s32, 2
        // Predicated region
        $region97: #{tpu_custom_call.1} parent=95 // pred_check
          %p891 = pneg %p285
        $region98: #{tpu_custom_call.1} parent=95 // pred_check_branch
          %893 = sbr.rel (%p891) target = $region100
        $region99: #{tpu_custom_call.1} parent=95 // pred_region
          %s894 = sand.u32 %s270, 1
          %s895 = scalar_lea.sflag [#allocation4], %s894
          %s896 = sand.u32 %s270, 1
          %s897 = smul.addr %s896, 4
          %s898 = scalar_lea.vmem [#allocation13], %s897
          %900 = dma.done %s895, 64
        $region100: #{tpu_custom_call.1} parent=95 // pred_fallthru
          _
        // Predicated region
        $region101: #{tpu_custom_call.1} parent=95 // pred_check
          %p901 = pneg %p313
        $region102: #{tpu_custom_call.1} parent=95 // pred_check_branch
          %903 = sbr.rel (%p901) target = $region104
        $region103: #{tpu_custom_call.1} parent=95 // pred_region
          %s904 = sand.u32 %s38, 1
          %s905 = scalar_lea.sflag [#allocation15], %s904
          %s906 = sand.u32 %s298, 1
          %s907 = smul.addr %s906, 4
          %s908 = scalar_lea.vmem [#allocation14], %s907
          %910 = dma.done %s905, 64
        $region104: #{tpu_custom_call.1} parent=95 // pred_fallthru
          _
        // Predicated region
        $region105: #{tpu_custom_call.1} parent=95 // pred_check
          %p911 = pneg %p341
        $region106: #{tpu_custom_call.1} parent=95 // pred_check_branch
          %913 = sbr.rel (%p911) target = $region108
        $region107: #{tpu_custom_call.1} parent=95 // pred_region
          %s914 = sand.u32 %s38, 1
          %s915 = scalar_lea.sflag [#allocation15], %s914
          %s916 = sand.u32 %s326, 1
          %s917 = smul.addr %s916, 4
          %s918 = scalar_lea.vmem [#allocation16], %s917
          %920 = dma.done %s915, 64
        $region108: #{tpu_custom_call.1} parent=95 // pred_fallthru
          _
      $region96: #{tpu_custom_call.1} parent=5 // pred_fallthru
        _
    $region6: #{tpu_custom_call.1} parent=1 // loop_footer
      %s36 = sadd.s32 1, %s32
    $region7: #{tpu_custom_call.1} parent=1 // loop_footer_branch
      %31 = sbr.rel target = $region3
    $region8: #{tpu_custom_call.1} parent=1 // loop_exit
      _
    %921 = vsyncpa [#allocation3], 1
    %s922 = scalar_lea.sflag [#allocation3], 1
    %923 = vsyncpa %s922, 1
    %924 = vsyncpa [#allocation6], 1
    %s925 = scalar_lea.sflag [#allocation6], 1
    %926 = vsyncpa %s925, 1
    %927 = vsyncpa [#allocation9], 1
    %928 = vsyncpa [#allocation12], 1
    %929 = vsyncpa [#allocation4], 1
    %s930 = scalar_lea.sflag [#allocation4], 1
    %931 = vsyncpa %s930, 1
    %932 = vsyncpa [#allocation15], 1
    %s933 = scalar_lea.sflag [#allocation15], 1
    %934 = vsyncpa %s933, 1

</llo_original>
